<compile_context>
chip_gen: v7x
topology: tpu7x:2x2x1
jax: 0.10.0
libtpu: 0.0.40
codegen_flags: <defaults>
</compile_context>

<pallas_src>
import math

import jax
import jax.numpy as jnp
from jax.experimental import pallas as pl
from jax.experimental.pallas import tpu as pltpu


def _round_up(a, b):
    return ((a + b - 1) // b) * b


_GELU_C = math.sqrt(2.0 / math.pi)


def _gelu_tanh(x):
    # 0.5 * x * (1 + tanh(sqrt(2/pi) * (x + 0.044715 * x^3)))  (matches spec)
    return 0.5 * x * (1.0 + jnp.tanh(_GELU_C * (x + 0.044715 * (x * x * x))))


# ----------------------------- kernels ------------------------------------


def _mlp_kernel_out_acc(x_ref, w1_ref, b1_ref, w2_ref, b2_ref, o_ref):
    """f32-output path: accumulate hidden-slice contributions directly into
    the resident output block (out_spec index is constant across the hidden
    axis), so no separate accumulator scratch is needed."""
    h_idx = pl.program_id(1)

    h = jnp.dot(x_ref[...], w1_ref[...], preferred_element_type=jnp.float32)
    h = _gelu_tanh(h + b1_ref[...])                       # f32 GELU
    contrib = jnp.dot(h.astype(jnp.bfloat16), w2_ref[...],
                      preferred_element_type=jnp.float32)

    @pl.when(h_idx == 0)
    def _():
        o_ref[...] = contrib + b2_ref[...]                # first step: store

    @pl.when(h_idx != 0)
    def _():
        o_ref[...] += contrib                             # later steps: add


def _mlp_kernel_scratch_acc(x_ref, w1_ref, b1_ref, w2_ref, b2_ref, o_ref,
                            acc_ref):
    """Non-f32 output path: f32 VMEM accumulator, downcast at finalize."""
    h_idx = pl.program_id(1)

    h = jnp.dot(x_ref[...], w1_ref[...], preferred_element_type=jnp.float32)
    h = _gelu_tanh(h + b1_ref[...])
    contrib = jnp.dot(h.astype(jnp.bfloat16), w2_ref[...],
                      preferred_element_type=jnp.float32)

    @pl.when(h_idx == 0)
    def _():
        acc_ref[...] = contrib                            # no zero-init + add

    @pl.when(h_idx != 0)
    def _():
        acc_ref[...] += contrib

    @pl.when(h_idx == pl.num_programs(1) - 1)
    def _():
        o_ref[...] = (acc_ref[...] + b2_ref[...]).astype(o_ref.dtype)


# --------------------------- param preparation -----------------------------


def prepare_mlp_params(w1, b1, w2, b2):
    """Pad + cast the weights ONCE (hoisted out of the per-call hot path).

    w1: (dim, hidden), b1: (hidden,), w2: (hidden, dim), b2: (dim,).
    """
    dim, hidden = w1.shape
    assert w2.shape == (hidden, dim)
    assert b1.shape == (hidden,) and b2.shape == (dim,)

    dim_p = _round_up(dim, 128)        # lane-dense output stores
    hid_p = _round_up(hidden, 128)

    w1_p = jnp.pad(w1, ((0, dim_p - dim), (0, hid_p - hidden))).astype(jnp.bfloat16)
    w2_p = jnp.pad(w2, ((0, hid_p - hidden), (0, dim_p - dim))).astype(jnp.bfloat16)
    b1_p = jnp.pad(b1, ((0, hid_p - hidden),)).reshape(1, hid_p).astype(jnp.float32)
    b2_p = jnp.pad(b2, ((0, dim_p - dim),)).reshape(1, dim_p).astype(jnp.float32)

    return dict(w1=w1_p, b1=b1_p, w2=w2_p, b2=b2_p,
                dim=dim, hidden=hidden, dim_p=dim_p, hid_p=hid_p)


# --------------------------- tile / VMEM planning ---------------------------


def _vmem_budget_bytes():
    try:
        cap = int(pltpu.get_tpu_info().vmem_capacity_bytes)
    except Exception:
        cap = 64 << 20                  # v7x per-TC minimum; safe fallback
    # Leave ~25% headroom for compiler-internal scratch / semaphores so the
    # 2-deep pipeline is never silently collapsed.
    return max(32 << 20, int(cap * 3) // 4)


def _footprint_bytes(tile_m, tile_h, dim_p, use_scratch):
    est = (2 * tile_m * dim_p * 2      # x tiles (bf16, double-buffered)
           + 2 * dim_p * tile_h * 2    # w1 slices (bf16)
           + 2 * tile_h * dim_p * 2    # w2 slices (bf16)
           + 2 * 8 * tile_h * 4        # b1 (sublane-padded f32)
           + 2 * 8 * dim_p * 4         # b2
           + 2 * tile_m * dim_p * 4    # output tiles (f32 accumulation)
           + tile_m * tile_h * 4       # GELU intermediate (f32)
           + tile_m * tile_h * 2)      # bf16 copy fed to second matmul
    if use_scratch:
        est += tile_m * dim_p * 4      # f32 accumulator scratch
    return est


def _choose_tiles(n, dim_p, hid_p, use_scratch, tile_m_max=512):
    budget = _vmem_budget_bytes()

    # Token tile: multiple of 16 (bf16 sublane packing), clamped to the work.
    tile_m_cap = min(_round_up(tile_m_max, 16), _round_up(max(n, 1), 16))
    # Prefer >=2 token tiles when there are enough tokens, so v7x's two
    # TensorCores both get work on the "parallel" axis.
    if n >= 256 and _round_up(n, tile_m_cap) // tile_m_cap < 2:
        tile_m_cap = max(128, _round_up((n + 1) // 2, 16))

    tm_candidates = [t for t in (512, 384, 256, 128, 64, 32, 16) if t <= tile_m_cap]
    if not tm_candidates or tm_candidates[0] != tile_m_cap:
        tm_candidates = [tile_m_cap] + tm_candidates

    # Hidden tile: largest of 512/256/128 that divides hid_p (reduce tile_h
    # first when dim_p is large -- it is neither the M dim nor the output-N).
    th_candidates = [t for t in (512, 256, 128) if t <= hid_p and hid_p % t == 0]
    if not th_candidates:
        th_candidates = [hid_p]

    for tm in tm_candidates:
        for th in th_candidates:
            if _footprint_bytes(tm, th, dim_p, use_scratch) <= budget:
                return tm, th, budget
    # Last resort: smallest tiles even if over budget (compiler may
    # single-buffer); still correct.
    return tm_candidates[-1], th_candidates[-1], budget


# ------------------------------- wrapper ------------------------------------


def mlp_pallas(x, params, *, tile_m_max=512):
    """x: (..., dim).  params: output of prepare_mlp_params (padded bf16)."""
    dim, hidden = params["dim"], params["hidden"]
    dim_p, hid_p = params["dim_p"], params["hid_p"]

    orig_shape = x.shape
    assert orig_shape[-1] == dim
    x2 = x.reshape(-1, dim)
    n = x2.shape[0]

    out_dtype = jnp.dtype(x.dtype)
    use_scratch = out_dtype != jnp.dtype(jnp.float32)

    tile_m, tile_h, budget = _choose_tiles(n, dim_p, hid_p, use_scratch,
                                           tile_m_max=tile_m_max)

    n_p = _round_up(n, tile_m)
    x_p = jnp.pad(x2, ((0, n_p - n), (0, dim_p - dim))).astype(jnp.bfloat16)

    grid = (n_p // tile_m, hid_p // tile_h)
    n_tok_tiles = grid[0]

    footprint = _footprint_bytes(tile_m, tile_h, dim_p, use_scratch)
    vmem_limit = int(min(max(footprint + footprint // 2, 32 << 20), budget))

    # Advisory cost estimate for XLA's scheduler.
    w_bytes = 2 * (dim_p * hid_p + hid_p * dim_p) + 4 * (hid_p + dim_p)
    cost = pl.CostEstimate(
        flops=4 * n_p * dim_p * hid_p,
        transcendentals=n_p * hid_p,
        bytes_accessed=(n_p * dim_p * 2                      # x (bf16)
                        + n_p * dim_p * out_dtype.itemsize   # out
                        + w_bytes * n_tok_tiles))            # weights re-streamed

    kernel = _mlp_kernel_scratch_acc if use_scratch else _mlp_kernel_out_acc
    scratch = ([pltpu.VMEM((tile_m, dim_p), jnp.float32)] if use_scratch else [])

    out = pl.pallas_call(
        kernel,
        out_shape=jax.ShapeDtypeStruct((n_p, dim_p), out_dtype),
        grid_spec=pltpu.PrefetchScalarGridSpec(
            num_scalar_prefetch=0,
            grid=grid,
            in_specs=[
                pl.BlockSpec((tile_m, dim_p), lambda i, j: (i, 0)),   # x tile
                pl.BlockSpec((dim_p, tile_h), lambda i, j: (0, j)),   # w1 slice
                pl.BlockSpec((1, tile_h), lambda i, j: (0, j)),       # b1 slice
                pl.BlockSpec((tile_h, dim_p), lambda i, j: (j, 0)),   # w2 slice
                pl.BlockSpec((1, dim_p), lambda i, j: (0, 0)),        # b2
            ],
            out_specs=pl.BlockSpec((tile_m, dim_p), lambda i, j: (i, 0)),
            scratch_shapes=scratch,
        ),
        compiler_params=pltpu.CompilerParams(
            dimension_semantics=("parallel", "arbitrary"),
            vmem_limit_bytes=vmem_limit),
        cost_estimate=cost,
    )(x_p, params["w1"], params["b1"], params["w2"], params["b2"])

    return out[:n, :dim].reshape(orig_shape)


def mlp_pallas_unprepared(x, w1, b1, w2, b2, **kw):
    """Convenience wrapper (pads weights every call -- prefer preparing once)."""
    return mlp_pallas(x, prepare_mlp_params(w1, b1, w2, b2), **kw)


# ------------------------------- reference ----------------------------------


def init_mlp_params(key, dim, dtype=jnp.float32):
    """Xavier-normal weights, zero biases (matches the PyTorch __init__)."""
    hidden = dim * 4
    k1, k2 = jax.random.split(key)
    std1 = math.sqrt(2.0 / (dim + hidden))
    std2 = math.sqrt(2.0 / (hidden + dim))
    # PyTorch weight layout is (out, in); kernel uses (in, out) -> transpose.
    w1 = (jax.random.normal(k1, (hidden, dim), dtype) * std1).T
    w2 = (jax.random.normal(k2, (dim, hidden), dtype) * std2).T
    b1 = jnp.zeros((hidden,), dtype)
    b2 = jnp.zeros((dim,), dtype)
    return w1, b1, w2, b2


def mlp_ref(x, w1, b1, w2, b2):
    h = _gelu_tanh(x @ w1 + b1)
    return h @ w2 + b2


if __name__ == "__main__":
    key = jax.random.PRNGKey(0)
    kx, kp = jax.random.split(key)

    batch, seq, dim = 2, 8, 32          # 16 tokens, dim=32, hidden=128
    x = jax.random.normal(kx, (batch, seq, dim), jnp.float32)
    w1, b1, w2, b2 = init_mlp_params(kp, dim)

    # Hoisted one-time weight pad/cast (perf feedback): do it outside the hot path.
    params = prepare_mlp_params(w1, b1, w2, b2)

    y = mlp_pallas(x, params)
    jax.block_until_ready(y)

    y_ref = mlp_ref(x, w1, b1, w2, b2)
    assert y.shape == x.shape
    # bf16 matmul operands (f32 accumulation) -> loosened tolerance vs f32 ref.
    assert jnp.allclose(y, y_ref, atol=5e-2, rtol=5e-2), "mismatch vs reference"

    print("KERNEL_OK")
</pallas_src>

<mosaic_0001>
module attributes {stable_mosaic.version = 11 : i64} {
  func.func @_mlp_kernel_out_acc(%arg0: i32, %arg1: i32, %arg2: memref<16x128xbf16, #tpu.memory_space<vmem>>, %arg3: memref<128x128xbf16, #tpu.memory_space<vmem>>, %arg4: memref<1x128xf32, #tpu.memory_space<vmem>>, %arg5: memref<128x128xbf16, #tpu.memory_space<vmem>>, %arg6: memref<1x128xf32, #tpu.memory_space<vmem>>, %arg7: memref<16x128xf32, #tpu.memory_space<vmem>>) attributes {dimension_semantics = [#tpu.dimension_semantics<parallel>, #tpu.dimension_semantics<arbitrary>], iteration_bounds = array<i64: 1, 1>, scalar_prefetch = 0 : i64, scratch_operands = 0 : i64, tpu.core_type = #tpu.core_type<tc>, window_params = [{transform_indices = @transform_0, window_bounds = array<i64: 16, 128>}, {transform_indices = @transform_1, window_bounds = array<i64: 128, 128>}, {transform_indices = @transform_2, window_bounds = array<i64: 1, 128>}, {transform_indices = @transform_3, window_bounds = array<i64: 128, 128>}, {pipeline_mode = #tpu.pipeline_mode<synchronous>, transform_indices = @transform_4, window_bounds = array<i64: 1, 128>}, {transform_indices = @transform_5, window_bounds = array<i64: 16, 128>}]} {
    %c0 = arith.constant 0 : index
    %c0_0 = arith.constant 0 : index
    %0 = vector.load %arg2[%c0, %c0_0] : memref<16x128xbf16, #tpu.memory_space<vmem>>, vector<16x128xbf16>
    %c0_1 = arith.constant 0 : index
    %c0_2 = arith.constant 0 : index
    %1 = vector.load %arg3[%c0_1, %c0_2] : memref<128x128xbf16, #tpu.memory_space<vmem>>, vector<128x128xbf16>
    %cst = arith.constant dense<0.000000e+00> : vector<16x128xf32>
    %2 = tpu.matmul %0, %1, %cst {dimension_numbers = #tpu.dot_dimension_numbers<[1], [0], [0], [1], [0, 0, 1, 1], [], []>} : vector<16x128xbf16>, vector<128x128xbf16>, vector<16x128xf32> -> vector<16x128xf32>
    %c0_3 = arith.constant 0 : index
    %c0_4 = arith.constant 0 : index
    %3 = vector.load %arg4[%c0_3, %c0_4] : memref<1x128xf32, #tpu.memory_space<vmem>>, vector<1x128xf32>
    %4 = vector.broadcast %3 : vector<1x128xf32> to vector<16x128xf32>
    %5 = arith.addf %2, %4 : vector<16x128xf32>
    %cst_5 = arith.constant 5.000000e-01 : f32
    %6 = vector.broadcast %cst_5 : f32 to vector<16x128xf32>
    %7 = arith.mulf %6, %5 : vector<16x128xf32>
    %8 = arith.mulf %5, %5 : vector<16x128xf32>
    %9 = arith.mulf %8, %5 : vector<16x128xf32>
    %cst_6 = arith.constant 4.471500e-02 : f32
    %10 = vector.broadcast %cst_6 : f32 to vector<16x128xf32>
    %11 = arith.mulf %10, %9 : vector<16x128xf32>
    %12 = arith.addf %5, %11 : vector<16x128xf32>
    %cst_7 = arith.constant 0.797884583 : f32
    %13 = vector.broadcast %cst_7 : f32 to vector<16x128xf32>
    %14 = arith.mulf %13, %12 : vector<16x128xf32>
    %15 = math.tanh %14 : vector<16x128xf32>
    %cst_8 = arith.constant 1.000000e+00 : f32
    %16 = vector.broadcast %cst_8 : f32 to vector<16x128xf32>
    %17 = arith.addf %16, %15 : vector<16x128xf32>
    %18 = arith.mulf %7, %17 : vector<16x128xf32>
    %19 = arith.truncf %18 : vector<16x128xf32> to vector<16x128xbf16>
    %c0_9 = arith.constant 0 : index
    %c0_10 = arith.constant 0 : index
    %20 = vector.load %arg5[%c0_9, %c0_10] : memref<128x128xbf16, #tpu.memory_space<vmem>>, vector<128x128xbf16>
    %cst_11 = arith.constant dense<0.000000e+00> : vector<16x128xf32>
    %21 = tpu.matmul %19, %20, %cst_11 {dimension_numbers = #tpu.dot_dimension_numbers<[1], [0], [0], [1], [0, 0, 1, 1], [], []>} : vector<16x128xbf16>, vector<128x128xbf16>, vector<16x128xf32> -> vector<16x128xf32>
    %c0_i32 = arith.constant 0 : i32
    %22 = arith.cmpi eq, %arg1, %c0_i32 : i32
    %23 = arith.extui %22 : i1 to i32
    %c0_i32_12 = arith.constant 0 : i32
    %24 = arith.cmpi ne, %23, %c0_i32_12 : i32
    scf.if %24 {
      %c0_15 = arith.constant 0 : index
      %c0_16 = arith.constant 0 : index
      %28 = vector.load %arg6[%c0_15, %c0_16] : memref<1x128xf32, #tpu.memory_space<vmem>>, vector<1x128xf32>
      %29 = vector.broadcast %28 : vector<1x128xf32> to vector<16x128xf32>
      %30 = arith.addf %21, %29 : vector<16x128xf32>
      %c0_17 = arith.constant 0 : index
      %c0_18 = arith.constant 0 : index
      %31 = vector.load %arg7[%c0_17, %c0_18] : memref<16x128xf32, #tpu.memory_space<vmem>>, vector<16x128xf32>
      tpu.vector_store %arg7[%c0_17, %c0_18], %30 {strides = array<i32>} : memref<16x128xf32, #tpu.memory_space<vmem>>, vector<16x128xf32>,
    } else {
    }
    %c0_i32_13 = arith.constant 0 : i32
    %25 = arith.cmpi ne, %arg1, %c0_i32_13 : i32
    %26 = arith.extui %25 : i1 to i32
    %c0_i32_14 = arith.constant 0 : i32
    %27 = arith.cmpi ne, %26, %c0_i32_14 : i32
    scf.if %27 {
      %c0_15 = arith.constant 0 : index
      %c0_16 = arith.constant 0 : index
      %28 = vector.load %arg7[%c0_15, %c0_16] : memref<16x128xf32, #tpu.memory_space<vmem>>, vector<16x128xf32>
      %29 = arith.addf %28, %21 : vector<16x128xf32>
      %c0_17 = arith.constant 0 : index
      %c0_18 = arith.constant 0 : index
      %30 = vector.load %arg7[%c0_17, %c0_18] : memref<16x128xf32, #tpu.memory_space<vmem>>, vector<16x128xf32>
      tpu.vector_store %arg7[%c0_17, %c0_18], %29 {strides = array<i32>} : memref<16x128xf32, #tpu.memory_space<vmem>>, vector<16x128xf32>,
    } else {
    }
    return
  }
  func.func @transform_0(%arg0: i32, %arg1: i32) -> (i32, i32) {
    %c0_i32 = arith.constant 0 : i32
    %c0_i32_0 = arith.constant 0 : i32
    return %arg0, %c0_i32 : i32, i32
  }
  func.func @transform_1(%arg0: i32, %arg1: i32) -> (i32, i32) {
    %c0_i32 = arith.constant 0 : i32
    %c0_i32_0 = arith.constant 0 : i32
    return %c0_i32, %arg1 : i32, i32
  }
  func.func @transform_2(%arg0: i32, %arg1: i32) -> (i32, i32) {
    %c0_i32 = arith.constant 0 : i32
    %c0_i32_0 = arith.constant 0 : i32
    return %c0_i32, %arg1 : i32, i32
  }
  func.func @transform_3(%arg0: i32, %arg1: i32) -> (i32, i32) {
    %c0_i32 = arith.constant 0 : i32
    %c0_i32_0 = arith.constant 0 : i32
    return %arg1, %c0_i32 : i32, i32
  }
  func.func @transform_4(%arg0: i32, %arg1: i32) -> (i32, i32) {
    %c0_i32 = arith.constant 0 : i32
    %c0_i32_0 = arith.constant 0 : i32
    %c0_i32_1 = arith.constant 0 : i32
    return %c0_i32, %c0_i32_0 : i32, i32
  }
  func.func @transform_5(%arg0: i32, %arg1: i32) -> (i32, i32) {
    %c0_i32 = arith.constant 0 : i32
    %c0_i32_0 = arith.constant 0 : i32
    return %arg0, %c0_i32 : i32, i32
  }
}

</mosaic_0001>

<llo_original>
// kernel: tpu_custom_call.1
$region0: #{tpu_custom_call.1}
  #allocation0 [shape = 'u32[]', space=smem, size = 0x4, offset = 0x4, fixed_abs, tag = 'smem constant byte address 0x4 - core index']
  #allocation1 [shape = 'u32[144,128]{1,0:T(1,128)}', space=vmem, size = 0x12000, scoped, tag = 'internal scratch']
  %s0 = inlined_call_operand.hbm [shape: bf16[16,128], index: 0, kind: input, shape index: {}]
  %s1 = inlined_call_operand.hbm [shape: bf16[128,128], index: 1, kind: input, shape index: {}]
  %s2 = inlined_call_operand.vmem [shape: f32[1,128], index: 2, kind: input, shape index: {}]
  %s3 = inlined_call_operand.hbm [shape: bf16[128,128], index: 3, kind: input, shape index: {}]
  %s4 = inlined_call_operand.vmem [shape: f32[1,128], index: 4, kind: input, shape index: {}]
  %s5 = inlined_call_operand.hbm [shape: f32[16,128], index: 5, kind: output, shape index: {}]
  %s6 = sld [smem:[#allocation0]]
  $region50: #{tpu_custom_call.1} parent=0
    _
  %s8 = ssub.s32 1, %s6
  %s9 = scalar_select 0, %s8, %s6
  $region1: #{tpu_custom_call.1} parent=0
    #allocation2 [shape = 'u8[4096]{0}', space=vmem, size = 0x1000, scoped, tag = 'input window, operand 0, single buffered']
    #allocation3 [shape = 's32[1]{0}', space=sflag, size = 0x4, scoped, tag = 'scoped memory for tpu_custom_call.1']
    #allocation4 [shape = 's32[1]{0}', space=sflag, size = 0x4, scoped, tag = 'scoped memory for tpu_custom_call.1']
    #allocation5 [shape = 'u8[32768]{0}', space=vmem, size = 0x8000, scoped, tag = 'input window, operand 1, single buffered']
    #allocation6 [shape = 's32[1]{0}', space=sflag, size = 0x4, scoped, tag = 'scoped memory for tpu_custom_call.1']
    #allocation7 [shape = 'u8[32768]{0}', space=vmem, size = 0x8000, scoped, tag = 'input window, operand 3, single buffered']
    #allocation8 [shape = 'u8[8192]{0}', space=vmem, size = 0x2000, scoped, tag = 'output window, operand 0, single buffered']
    %10 = vsyncpa [#allocation3], 0
    %11 = vsyncpa [#allocation6], 0
    %12 = vsyncpa [#allocation4], 0
    // Predicated region
    $region2: #{tpu_custom_call.1} parent=1 // pred_check
      _
    $region3: #{tpu_custom_call.1} parent=1 // pred_check_branch
      %14 = sbr.rel (0) target = $region5
    $region4: #{tpu_custom_call.1} parent=1 // pred_region
      %s16 = ssub.s32 128, 128
      %17 = vsyncadd [#allocation3], %s16
      %s18 = sshll.u32 [#allocation2], 4
      %s19 = int_to_ptr.vmem [resolvable:$true] %s18
      %24 = dma.hbm_to_vmem [thread:$0]  %s0, 128, %s19, [#allocation3], 64, 64, 4
    $region5: #{tpu_custom_call.1} parent=1 // pred_fallthru
      _
    // Predicated region
    $region6: #{tpu_custom_call.1} parent=1 // pred_check
      _
    $region7: #{tpu_custom_call.1} parent=1 // pred_check_branch
      %26 = sbr.rel (0) target = $region9
    $region8: #{tpu_custom_call.1} parent=1 // pred_region
      %s28 = ssub.s32 1024, 1024
      %29 = vsyncadd [#allocation6], %s28
      %s30 = sshll.u32 [#allocation5], 4
      %s31 = int_to_ptr.vmem [resolvable:$true] %s30
      %36 = dma.hbm_to_vmem [thread:$0]  %s1, 1024, %s31, [#allocation6], 64, 64, 4
    $region9: #{tpu_custom_call.1} parent=1 // pred_fallthru
      _
    // Predicated region
    $region10: #{tpu_custom_call.1} parent=1 // pred_check
      _
    $region11: #{tpu_custom_call.1} parent=1 // pred_check_branch
      %38 = sbr.rel (0) target = $region13
    $region12: #{tpu_custom_call.1} parent=1 // pred_region
      _
    $region13: #{tpu_custom_call.1} parent=1 // pred_fallthru
      _
    // Predicated region
    $region14: #{tpu_custom_call.1} parent=1 // pred_check
      _
    $region15: #{tpu_custom_call.1} parent=1 // pred_check_branch
      %40 = sbr.rel (0) target = $region17
    $region16: #{tpu_custom_call.1} parent=1 // pred_region
      %s42 = ssub.s32 1024, 1024
      %43 = vsyncadd [#allocation6], %s42
      %s44 = sshll.u32 [#allocation7], 4
      %s45 = int_to_ptr.vmem [resolvable:$true] %s44
      %50 = dma.hbm_to_vmem [thread:$0]  %s3, 1024, %s45, [#allocation6], 64, 64, 4
    $region17: #{tpu_custom_call.1} parent=1 // pred_fallthru
      _
    // Predicated region
    $region18: #{tpu_custom_call.1} parent=1 // pred_check
      _
    $region19: #{tpu_custom_call.1} parent=1 // pred_check_branch
      %52 = sbr.rel (0) target = $region21
    $region20: #{tpu_custom_call.1} parent=1 // pred_region
      _
    $region21: #{tpu_custom_call.1} parent=1 // pred_fallthru
      _
    // Predicated region
    $region22: #{tpu_custom_call.1} parent=1 // pred_check
      _
    $region23: #{tpu_custom_call.1} parent=1 // pred_check_branch
      %54 = sbr.rel (0) target = $region25
    $region24: #{tpu_custom_call.1} parent=1 // pred_region
      %55 = dma.done [#allocation3], 128
    $region25: #{tpu_custom_call.1} parent=1 // pred_fallthru
      _
    // Predicated region
    $region26: #{tpu_custom_call.1} parent=1 // pred_check
      _
    $region27: #{tpu_custom_call.1} parent=1 // pred_check_branch
      %57 = sbr.rel (0) target = $region29
    $region28: #{tpu_custom_call.1} parent=1 // pred_region
      %58 = dma.done [#allocation6], 1024
    $region29: #{tpu_custom_call.1} parent=1 // pred_fallthru
      _
    // Predicated region
    $region30: #{tpu_custom_call.1} parent=1 // pred_check
      _
    $region31: #{tpu_custom_call.1} parent=1 // pred_check_branch
      %60 = sbr.rel (0) target = $region33
    $region32: #{tpu_custom_call.1} parent=1 // pred_region
      %61 = dma.done [#allocation6], 1024
    $region33: #{tpu_custom_call.1} parent=1 // pred_fallthru
      _
    %v63 = vld [vmem:[#allocation2] sm:$0xf]
    %v64 = vld [vmem:[#allocation2 + $0x4] sm:$0xf]
    %v65 = vld [vmem:[#allocation5] sm:$0xf]
    %v66 = vld [vmem:[#allocation5 + $0x4] sm:$0xf]
    %v67 = vld [vmem:[#allocation5 + $0x8] sm:$0xf]
    %v68 = vld [vmem:[#allocation5 + $0xc] sm:$0xf]
    %v69 = vld [vmem:[#allocation5 + $0x10] sm:$0xf]
    %v70 = vld [vmem:[#allocation5 + $0x14] sm:$0xf]
    %v71 = vld [vmem:[#allocation5 + $0x18] sm:$0xf]
    %v72 = vld [vmem:[#allocation5 + $0x1c] sm:$0xf]
    %v73 = vld [vmem:[#allocation5 + $0x20] sm:$0xf]
    %v74 = vld [vmem:[#allocation5 + $0x24] sm:$0xf]
    %v75 = vld [vmem:[#allocation5 + $0x28] sm:$0xf]
    %v76 = vld [vmem:[#allocation5 + $0x2c] sm:$0xf]
    %v77 = vld [vmem:[#allocation5 + $0x30] sm:$0xf]
    %v78 = vld [vmem:[#allocation5 + $0x34] sm:$0xf]
    %v79 = vld [vmem:[#allocation5 + $0x38] sm:$0xf]
    %v80 = vld [vmem:[#allocation5 + $0x3c] sm:$0xf]
    %v81 = vld [vmem:[%s2] sm:$0x1]
    %v83 = vlaneseq
    %v84 = vshrl.u32 %v83, 7
    %v85 = vsub.s32 0, %v84
    %v86 = vrot.slane %v81, %v85
    %v90 = vunpack.c.l.b16 %v63
    %v91 = vunpack.c.l.b16 %v64
    %v92 = vpack.c.b16 %v91, %v90
    %v110 = vunpack.c.l.b16 %v65
    %v111 = vunpack.c.l.b16 %v66
    %v112 = vunpack.c.l.b16 %v67
    %v113 = vunpack.c.l.b16 %v68
    %v114 = vunpack.c.l.b16 %v69
    %v115 = vunpack.c.l.b16 %v70
    %v116 = vunpack.c.l.b16 %v71
    %v117 = vunpack.c.l.b16 %v72
    %v118 = vunpack.c.l.b16 %v73
    %v119 = vunpack.c.l.b16 %v74
    %v120 = vunpack.c.l.b16 %v75
    %v121 = vunpack.c.l.b16 %v76
    %v122 = vunpack.c.l.b16 %v77
    %v123 = vunpack.c.l.b16 %v78
    %v124 = vunpack.c.l.b16 %v79
    %v125 = vunpack.c.l.b16 %v80
    %v126 = vpack.c.b16 %v111, %v110
    %v127 = vpack.c.b16 %v113, %v112
    %v128 = vpack.c.b16 %v115, %v114
    %v129 = vpack.c.b16 %v117, %v116
    %v130 = vpack.c.b16 %v119, %v118
    %v131 = vpack.c.b16 %v121, %v120
    %v132 = vpack.c.b16 %v123, %v122
    %v133 = vpack.c.b16 %v125, %v124
    %142 = vmatprep.subr.bf16.mxu0 0
    %143 = vmatpush1.bf16.msra.mxu0 %v126
    %144 = vmatprep.subr.bf16.mxu0 0
    %145 = vmatpush1.bf16.msra.mxu0 %v127
    %146 = vmatprep.subr.bf16.mxu0 0
    %147 = vmatpush1.bf16.msra.mxu0 %v128
    %148 = vmatprep.subr.bf16.mxu0 0
    %149 = vmatpush1.bf16.msra.mxu0 %v129
    %150 = vmatprep.subr.bf16.mxu0 0
    %151 = vmatpush1.bf16.msra.mxu0 %v130
    %152 = vmatprep.subr.bf16.mxu0 0
    %153 = vmatpush1.bf16.msra.mxu0 %v131
    %154 = vmatprep.subr.bf16.mxu0 0
    %155 = vmatpush1.bf16.msra.mxu0 %v132
    %156 = vmatprep.subr.bf16.mxu0 0
    %157 = vmatpush1.bf16.msra.mxu0 %v133
    %158 = vmatprep.subr.bf16.mxu0 0
    %159 = vmatpush1.bf16.msra.mxu0 0
    %160 = vmatprep.subr.bf16.mxu0 0
    %161 = vmatpush1.bf16.msra.mxu0 0
    %162 = vmatprep.subr.bf16.mxu0 0
    %163 = vmatpush1.bf16.msra.mxu0 0
    %164 = vmatprep.subr.bf16.mxu0 0
    %165 = vmatpush1.bf16.msra.mxu0 0
    %166 = vmatprep.subr.bf16.mxu0 0
    %167 = vmatpush1.bf16.msra.mxu0 0
    %168 = vmatprep.subr.bf16.mxu0 0
    %169 = vmatpush1.bf16.msra.mxu0 0
    %170 = vmatprep.subr.bf16.mxu0 0
    %171 = vmatpush1.bf16.msra.mxu0 0
    %172 = vmatprep.subr.bf16.mxu0 0
    %173 = vmatpush1.bf16.msra.mxu0 0
    %174 = vmatprep.mubr.bf16.mxu0 0
    %175 = vmatmul.mubr.bf16.gmra.mrb[0].mxu0 %v92
    %v176 = vpop.f32.mrb[0].mxu0
    %v177 = vadd.f32 %v86, %v176
    %v178 = vpop.f32.mrb[0].mxu0
    %v179 = vpop.f32.mrb[0].mxu0
    %v180 = vadd.f32 %v86, %v179
    %v181 = vpop.f32.mrb[0].mxu0
    %182 = vdwg.mxu0
    %v183 = vmul.f32 %v177, 0.5
    %v184 = vmul.f32 %v180, 0.5
    %v185 = vmul.f32 %v177, %v177
    %v186 = vmul.f32 %v180, %v180
    %v187 = vmul.f32 %v185, %v177
    %v188 = vmul.f32 %v186, %v180
    %v189 = vmul.f32 %v187, 0.044715
    %v190 = vmul.f32 %v188, 0.044715
    %v191 = vadd.f32 %v177, %v189
    %v192 = vadd.f32 %v180, %v190
    %v193 = vmul.f32 %v191, 0.7978846
    %v194 = vmul.f32 %v192, 0.7978846
    %v195 = vtanh.pop %v193
    %v196 = vtanh.pop %v194
    %v197 = vadd.f32 %v195, 1.0
    %v198 = vadd.f32 %v196, 1.0
    %v199 = vmul.f32 %v183, %v197
    %v200 = vmul.f32 %v184, %v198
    %v201 = vpack.c.bf16 %v200, %v199
    %v202 = vld [vmem:[#allocation7] sm:$0xf]
    %v203 = vld [vmem:[#allocation7 + $0x4] sm:$0xf]
    %v204 = vld [vmem:[#allocation7 + $0x8] sm:$0xf]
    %v205 = vld [vmem:[#allocation7 + $0xc] sm:$0xf]
    %v206 = vld [vmem:[#allocation7 + $0x10] sm:$0xf]
    %v207 = vld [vmem:[#allocation7 + $0x14] sm:$0xf]
    %v208 = vld [vmem:[#allocation7 + $0x18] sm:$0xf]
    %v209 = vld [vmem:[#allocation7 + $0x1c] sm:$0xf]
    %v210 = vld [vmem:[#allocation7 + $0x20] sm:$0xf]
    %v211 = vld [vmem:[#allocation7 + $0x24] sm:$0xf]
    %v212 = vld [vmem:[#allocation7 + $0x28] sm:$0xf]
    %v213 = vld [vmem:[#allocation7 + $0x2c] sm:$0xf]
    %v214 = vld [vmem:[#allocation7 + $0x30] sm:$0xf]
    %v215 = vld [vmem:[#allocation7 + $0x34] sm:$0xf]
    %v216 = vld [vmem:[#allocation7 + $0x38] sm:$0xf]
    %v217 = vld [vmem:[#allocation7 + $0x3c] sm:$0xf]
    %v234 = vunpack.c.l.b16 %v202
    %v235 = vunpack.c.l.b16 %v203
    %v236 = vunpack.c.l.b16 %v204
    %v237 = vunpack.c.l.b16 %v205
    %v238 = vunpack.c.l.b16 %v206
    %v239 = vunpack.c.l.b16 %v207
    %v240 = vunpack.c.l.b16 %v208
    %v241 = vunpack.c.l.b16 %v209
    %v242 = vunpack.c.l.b16 %v210
    %v243 = vunpack.c.l.b16 %v211
    %v244 = vunpack.c.l.b16 %v212
    %v245 = vunpack.c.l.b16 %v213
    %v246 = vunpack.c.l.b16 %v214
    %v247 = vunpack.c.l.b16 %v215
    %v248 = vunpack.c.l.b16 %v216
    %v249 = vunpack.c.l.b16 %v217
    %v250 = vpack.c.b16 %v235, %v234
    %v251 = vpack.c.b16 %v237, %v236
    %v252 = vpack.c.b16 %v239, %v238
    %v253 = vpack.c.b16 %v241, %v240
    %v254 = vpack.c.b16 %v243, %v242
    %v255 = vpack.c.b16 %v245, %v244
    %v256 = vpack.c.b16 %v247, %v246
    %v257 = vpack.c.b16 %v249, %v248
    %266 = vmatprep.subr.bf16.mxu0 0
    %267 = vmatpush1.bf16.msra.mxu0 %v250
    %268 = vmatprep.subr.bf16.mxu0 0
    %269 = vmatpush1.bf16.msra.mxu0 %v251
    %270 = vmatprep.subr.bf16.mxu0 0
    %271 = vmatpush1.bf16.msra.mxu0 %v252
    %272 = vmatprep.subr.bf16.mxu0 0
    %273 = vmatpush1.bf16.msra.mxu0 %v253
    %274 = vmatprep.subr.bf16.mxu0 0
    %275 = vmatpush1.bf16.msra.mxu0 %v254
    %276 = vmatprep.subr.bf16.mxu0 0
    %277 = vmatpush1.bf16.msra.mxu0 %v255
    %278 = vmatprep.subr.bf16.mxu0 0
    %279 = vmatpush1.bf16.msra.mxu0 %v256
    %280 = vmatprep.subr.bf16.mxu0 0
    %281 = vmatpush1.bf16.msra.mxu0 %v257
    %282 = vmatprep.subr.bf16.mxu0 0
    %283 = vmatpush1.bf16.msra.mxu0 0
    %284 = vmatprep.subr.bf16.mxu0 0
    %285 = vmatpush1.bf16.msra.mxu0 0
    %286 = vmatprep.subr.bf16.mxu0 0
    %287 = vmatpush1.bf16.msra.mxu0 0
    %288 = vmatprep.subr.bf16.mxu0 0
    %289 = vmatpush1.bf16.msra.mxu0 0
    %290 = vmatprep.subr.bf16.mxu0 0
    %291 = vmatpush1.bf16.msra.mxu0 0
    %292 = vmatprep.subr.bf16.mxu0 0
    %293 = vmatpush1.bf16.msra.mxu0 0
    %294 = vmatprep.subr.bf16.mxu0 0
    %295 = vmatpush1.bf16.msra.mxu0 0
    %296 = vmatprep.subr.bf16.mxu0 0
    %297 = vmatpush1.bf16.msra.mxu0 0
    %298 = vmatprep.mubr.bf16.mxu0 0
    %299 = vmatmul.mubr.bf16.gmra.mrb[0].mxu0 %v201
    %v300 = vpop.f32.mrb[0].mxu0
    %v301 = vadd.f32 0.0, %v300
    %v302 = vpop.f32.mrb[0].mxu0
    %v303 = vpop.f32.mrb[0].mxu0
    %v304 = vadd.f32 0.0, %v303
    %v305 = vpop.f32.mrb[0].mxu0
    %306 = vdwg.mxu0
    %p307 = scmp.eq.s32.totalorder 0, 0
    // Predicated region
    $region34: #{tpu_custom_call.1} parent=1 // pred_check
      %p308 = pneg %p307
    $region35: #{tpu_custom_call.1} parent=1 // pred_check_branch
      %310 = sbr.rel (%p308) target = $region37
    $region36: #{tpu_custom_call.1} parent=1 // pred_region
      %v311 = vld [vmem:[%s4] sm:$0x1]
      %v313 = vlaneseq
      %v314 = vshrl.u32 %v313, 7
      %v315 = vsub.s32 0, %v314
      %v316 = vrot.slane %v311, %v315
      %v318 = vadd.f32 %v301, %v316
      %v319 = vadd.f32 %v304, %v316
      %320 = vst [vmem:[#allocation8] sm:$0xff] %v318
      %321 = vst [vmem:[#allocation8 + $0x8] sm:$0xff] %v319
    $region37: #{tpu_custom_call.1} parent=1 // pred_fallthru
      _
    %p322 = scmp.ne.s32.totalorder 0, 0
    // Predicated region
    $region38: #{tpu_custom_call.1} parent=1 // pred_check
      %p323 = pneg %p322
    $region39: #{tpu_custom_call.1} parent=1 // pred_check_branch
      %325 = sbr.rel (%p323) target = $region41
    $region40: #{tpu_custom_call.1} parent=1 // pred_region
      %v326 = vld [vmem:[#allocation8] sm:$0xff]
      %v327 = vld [vmem:[#allocation8 + $0x8] sm:$0xff]
      %v328 = vadd.f32 %v326, %v301
      %v329 = vadd.f32 %v327, %v304
      %330 = vst [vmem:[#allocation8] sm:$0xff] %v328
      %331 = vst [vmem:[#allocation8 + $0x8] sm:$0xff] %v329
    $region41: #{tpu_custom_call.1} parent=1 // pred_fallthru
      _
    // Predicated region
    $region42: #{tpu_custom_call.1} parent=1 // pred_check
      _
    $region43: #{tpu_custom_call.1} parent=1 // pred_check_branch
      %333 = sbr.rel (0) target = $region45
    $region44: #{tpu_custom_call.1} parent=1 // pred_region
      %s335 = ssub.s32 256, 256
      %336 = vsyncadd [#allocation4], %s335
      %s337 = sshll.u32 [#allocation8], 4
      %s338 = int_to_ptr.vmem [resolvable:$true] %s337
      %343 = dma.vmem_to_hbm [thread:$0]  %s338, 256, %s5, [#allocation4], 128, 128, 8
    $region45: #{tpu_custom_call.1} parent=1 // pred_fallthru
      _
    // Predicated region
    $region46: #{tpu_custom_call.1} parent=1 // pred_check
      _
    $region47: #{tpu_custom_call.1} parent=1 // pred_check_branch
      %345 = sbr.rel (0) target = $region49
    $region48: #{tpu_custom_call.1} parent=1 // pred_region
      %346 = dma.done [#allocation4], 256
    $region49: #{tpu_custom_call.1} parent=1 // pred_fallthru
      _
    %347 = vsyncpa [#allocation3], 1
    %348 = vsyncpa [#allocation6], 1
    %349 = vsyncpa [#allocation4], 1

</llo_original>
